<compile_context>
chip_gen: v6e
topology: v6e:2x2x1
jax: 0.10.0
libtpu: 0.0.40
codegen_flags: <defaults>
</compile_context>

<pallas_src>
import functools
from typing import NamedTuple

import jax
import jax.numpy as jnp
from jax.experimental import pallas as pl
from jax.experimental.pallas import tpu as pltpu


# ---------------------------------------------------------------------------
# Kernels
# ---------------------------------------------------------------------------

def _transition_resident_kernel(x_ref, w1_ref, b1_ref, w2_ref, o_ref):
    """Weights-resident path: grid = (row_blocks,), full W1/W2 live in VMEM."""
    di_p = w2_ref.shape[0]
    # LayerNorm in f32 (affine folded into W1 / bias by the wrapper).
    x = x_ref[...].astype(jnp.float32)
    mean = jnp.mean(x, axis=-1, keepdims=True)
    xc = x - mean
    var = jnp.mean(xc * xc, axis=-1, keepdims=True)
    xn = (xc * jax.lax.rsqrt(var + 1e-5)).astype(w1_ref.dtype)
    # Single merged matmul-1 over [value | gate], f32 accumulation on the MXU.
    h = jnp.dot(xn, w1_ref[...], preferred_element_type=jnp.float32) + b1_ref[...]
    hx = h[:, :di_p]
    gate = h[:, di_p:]
    act = (gate * jax.nn.sigmoid(gate)) * hx          # SwiGLU (sigmoid -> EUP slot)
    o_ref[...] = jnp.dot(act.astype(w2_ref.dtype), w2_ref[...],
                         preferred_element_type=jnp.float32).astype(o_ref.dtype)


def _transition_tiled_kernel(x_ref, w1_ref, b1_ref, w2_ref, o_ref,
                             xn_ref, acc_ref=None):
    """Inner-tiled path: grid = (row_blocks, inner_tiles).

    The inner axis j tiles dim_inner: it is the N axis of matmul-1 and the
    reduction (K) axis of matmul-2.  W1 tiles are packed [value_j | gate_j].
    If acc_ref is None the (f32) output block itself is the accumulator.
    """
    j = pl.program_id(1)
    bn = w2_ref.shape[0]
    acc = o_ref if acc_ref is None else acc_ref

    @pl.when(j == 0)
    def _():
        # LayerNorm once per row block; cache normalized rows in bf16 for the MXU.
        x = x_ref[...].astype(jnp.float32)
        mean = jnp.mean(x, axis=-1, keepdims=True)
        xc = x - mean
        var = jnp.mean(xc * xc, axis=-1, keepdims=True)
        xn_ref[...] = (xc * jax.lax.rsqrt(var + 1e-5)).astype(xn_ref.dtype)

    xn = xn_ref[...]                                   # bf16 [bm, dim]

    # Merged matmul-1 on the [value_j | gate_j] tile (one dot instead of two).
    h = jnp.dot(xn, w1_ref[...], preferred_element_type=jnp.float32) + b1_ref[...]
    hx = h[:, :bn]
    gate = h[:, bn:]
    act = (gate * jax.nn.sigmoid(gate)) * hx           # SwiGLU

    # Matmul-2 partial for this inner tile, f32.
    partial = jnp.dot(act.astype(w2_ref.dtype), w2_ref[...],
                      preferred_element_type=jnp.float32)

    # Accumulate without a zero-init round trip.
    @pl.when(j == 0)
    def _():
        acc[...] = partial.astype(acc.dtype)

    @pl.when(j > 0)
    def _():
        acc[...] = (acc[...].astype(jnp.float32) + partial).astype(acc.dtype)

    if acc_ref is not None:
        @pl.when(j == pl.num_programs(1) - 1)
        def _():
            o_ref[...] = acc_ref[...].astype(o_ref.dtype)


# ---------------------------------------------------------------------------
# Host-side helpers
# ---------------------------------------------------------------------------

class TransitionConfig(NamedTuple):
    dim: int
    dim_inner: int     # original dim_inner
    di_p: int          # dim_inner padded to a multiple of 128
    bn: int            # inner tile width (== di_p for the resident path)
    n_inner: int       # number of inner tiles (1 for the resident path)
    resident: bool     # weights-resident fast path?
    vmem_limit: int    # per-generation VMEM budget (bytes)


def _round_up(x, n):
    return ((x + n - 1) // n) * n


def _vmem_budget_bytes():
    """Per-generation VMEM budget (never the full physical VMEM)."""
    kind = ""
    try:
        kind = jax.devices()[0].device_kind.lower()
    except Exception:
        pass
    if "v7" in kind:                      # v7x: 64 MiB physical per TC
        return 48 * 1024 * 1024
    if "v2" in kind or "v3" in kind:      # small-VMEM generations
        return 12 * 1024 * 1024
    return 96 * 1024 * 1024               # v4/v5e/v6e: 128 MiB physical


def _pick_bn(di_p, block_inner):
    """Largest multiple-of-128 divisor of di_p that is <= block_inner."""
    cap = max(128, min(block_inner, di_p))
    cand = (cap // 128) * 128
    while cand >= 128:
        if di_p % cand == 0:
            return cand
        cand -= 128
    return 128


def _choose_bm(m, block_m, cfg, x_bytes, out_bytes, acc_in_out):
    """Row block size from the VMEM budget + megacore constraint."""
    dim, bn = cfg.dim, cfg.bn
    # Conservatively count double-buffered weight tiles.
    weight_bytes = 2 * (dim * 2 * bn * 2 + 2 * bn * 4 + bn * dim * 2)
    per_row = (2 * dim * x_bytes            # x block, double-buffered
               + 2 * dim * out_bytes        # out block, double-buffered
               + dim * 2                    # bf16 xn scratch (tiled path)
               + (0 if (cfg.resident or acc_in_out) else dim * 4)  # f32 acc scratch
               + 2 * bn * 4 + bn * 4 + bn * 2)   # h / act temporaries
    avail = int(cfg.vmem_limit * 0.7) - weight_bytes
    if avail > per_row * 8:
        bm_cap = max(8, (avail // per_row) // 8 * 8)
    else:
        bm_cap = 8
    bm = min(block_m, bm_cap)
    if m > 8:
        # >= 2 row blocks so the "parallel" axis shards across v7x's 2 TensorCores.
        half_rows = _round_up((m + 1) // 2, 8)
        bm = min(bm, half_rows)
    else:
        bm = 8
    return max(8, bm)


def fold_transition_weights(gamma, beta, w1, w2, *, block_inner=512,
                            force_tiled=False, vmem_budget=None):
    """Fold the LayerNorm affine into W1 and pack bf16 weights.

    Call ONCE and reuse the result with transition_apply(); this keeps the
    per-call XLA-side weight traffic out of the hot path.
    Returns ((w1_packed, b1_packed, w2_packed), TransitionConfig).
    """
    dim, two_di = w1.shape
    dim_inner = two_di // 2
    assert w2.shape == (dim_inner, dim)
    if vmem_budget is None:
        vmem_budget = _vmem_budget_bytes()

    w1_f32 = w1.astype(jnp.float32)
    gamma_f32 = gamma.astype(jnp.float32)
    beta_f32 = beta.astype(jnp.float32)
    # (xn*gamma + beta) @ W1 == xn @ (gamma[:,None]*W1) + beta @ W1   (folded in f32)
    w1f = gamma_f32[:, None] * w1_f32
    b1 = beta_f32 @ w1_f32
    w1v, w1g = w1f[:, :dim_inner], w1f[:, dim_inner:]
    b1v, b1g = b1[:dim_inner], b1[dim_inner:]
    w2_f32 = w2.astype(jnp.float32)

    # Pad dim_inner to a multiple of 128 (padded columns/rows are zero -> inert).
    di_p = _round_up(dim_inner, 128)
    if di_p != dim_inner:
        pad = di_p - dim_inner
        w1v = jnp.pad(w1v, ((0, 0), (0, pad)))
        w1g = jnp.pad(w1g, ((0, 0), (0, pad)))
        b1v = jnp.pad(b1v, (0, pad))
        b1g = jnp.pad(b1g, (0, pad))
        w2_f32 = jnp.pad(w2_f32, ((0, pad), (0, 0)))

    # Resident fast path if double-buffered bf16 weights fit well inside the budget.
    weights_db = 2 * (dim * 2 * di_p * 2 + 2 * di_p * 4 + di_p * dim * 2)
    resident = (not force_tiled) and weights_db <= int(0.4 * vmem_budget)

    if resident:
        bn, n_inner = di_p, 1
        w1p = jnp.concatenate([w1v, w1g], axis=1).astype(jnp.bfloat16)
        b1p = jnp.concatenate([b1v, b1g]).reshape(1, 2 * di_p).astype(jnp.float32)
    else:
        bn = _pick_bn(di_p, block_inner)
        n_inner = di_p // bn
        # Each inner tile is a contiguous [value_j | gate_j] slab of width 2*bn.
        w1p = jnp.concatenate(
            [w1v.reshape(dim, n_inner, bn), w1g.reshape(dim, n_inner, bn)],
            axis=-1).reshape(dim, n_inner * 2 * bn).astype(jnp.bfloat16)
        b1p = jnp.concatenate(
            [b1v.reshape(n_inner, bn), b1g.reshape(n_inner, bn)],
            axis=-1).reshape(1, n_inner * 2 * bn).astype(jnp.float32)
    w2p = w2_f32.astype(jnp.bfloat16)

    cfg = TransitionConfig(dim=int(dim), dim_inner=int(dim_inner), di_p=int(di_p),
                           bn=int(bn), n_inner=int(n_inner), resident=bool(resident),
                           vmem_limit=int(vmem_budget))
    return (w1p, b1p, w2p), cfg


@functools.partial(jax.jit, static_argnames=("cfg", "block_m"))
def transition_apply(x, w1p, b1p, w2p, *, cfg, block_m=512):
    """Apply the fused Transition with pre-folded/packed weights."""
    orig_shape = x.shape
    dim = cfg.dim
    x2d = x.reshape(-1, dim)
    m = x2d.shape[0]
    out_dtype = x.dtype
    acc_in_out = (not cfg.resident) and (out_dtype == jnp.float32)

    bm = _choose_bm(m, block_m, cfg,
                    jnp.dtype(x.dtype).itemsize, jnp.dtype(out_dtype).itemsize,
                    acc_in_out)
    m_pad = _round_up(m, bm)
    if m_pad != m:
        # NOTE: padded rows go through LayerNorm as zeros (finite garbage) and are
        # sliced off below -- do not reuse the padded region.
        x2d = jnp.pad(x2d, ((0, m_pad - m), (0, 0)))

    if cfg.resident:
        out = pl.pallas_call(
            _transition_resident_kernel,
            out_shape=jax.ShapeDtypeStruct((m_pad, dim), out_dtype),
            grid_spec=pltpu.PrefetchScalarGridSpec(
                num_scalar_prefetch=0,
                grid=(m_pad // bm,),
                in_specs=[
                    pl.BlockSpec((bm, dim), lambda i: (i, 0)),          # x rows
                    pl.BlockSpec((dim, 2 * cfg.di_p), lambda i: (0, 0)),  # W1 (resident)
                    pl.BlockSpec((1, 2 * cfg.di_p), lambda i: (0, 0)),    # folded bias
                    pl.BlockSpec((cfg.di_p, dim), lambda i: (0, 0)),      # W2 (resident)
                ],
                out_specs=pl.BlockSpec((bm, dim), lambda i: (i, 0)),
            ),
            compiler_params=pltpu.CompilerParams(
                dimension_semantics=("parallel",),
                vmem_limit_bytes=cfg.vmem_limit),
        )(x2d, w1p, b1p, w2p)
    else:
        scratch = [pltpu.VMEM((bm, dim), jnp.bfloat16)]     # cached normalized rows
        if not acc_in_out:
            scratch.append(pltpu.VMEM((bm, dim), jnp.float32))  # f32 accumulator
        out = pl.pallas_call(
            _transition_tiled_kernel,
            out_shape=jax.ShapeDtypeStruct((m_pad, dim), out_dtype),
            grid_spec=pltpu.PrefetchScalarGridSpec(
                num_scalar_prefetch=0,
                grid=(m_pad // bm, cfg.n_inner),
                in_specs=[
                    pl.BlockSpec((bm, dim), lambda i, j: (i, 0)),        # x rows
                    pl.BlockSpec((dim, 2 * cfg.bn), lambda i, j: (0, j)),  # W1 tile [v|g]
                    pl.BlockSpec((1, 2 * cfg.bn), lambda i, j: (0, j)),    # bias tile
                    pl.BlockSpec((cfg.bn, dim), lambda i, j: (j, 0)),      # W2 tile
                ],
                out_specs=pl.BlockSpec((bm, dim), lambda i, j: (i, 0)),
                scratch_shapes=scratch,
            ),
            compiler_params=pltpu.CompilerParams(
                dimension_semantics=("parallel", "arbitrary"),
                vmem_limit_bytes=cfg.vmem_limit),
        )(x2d, w1p, b1p, w2p)

    if m_pad != m:
        out = out[:m]
    return out.reshape(orig_shape)


def transition(x, gamma, beta, w1, w2, *, block_m=512, block_inner=512,
               force_tiled=False):
    """Convenience wrapper: fold + apply.  For hot loops, fold once with
    fold_transition_weights() and call transition_apply() repeatedly."""
    packed, cfg = fold_transition_weights(gamma, beta, w1, w2,
                                          block_inner=block_inner,
                                          force_tiled=force_tiled)
    return transition_apply(x, *packed, cfg=cfg, block_m=block_m)


def reference(x, gamma, beta, w1, w2):
    """Pure-JAX f32 reference matching the PyTorch module."""
    xf = x.astype(jnp.float32)
    mean = jnp.mean(xf, axis=-1, keepdims=True)
    var = jnp.mean((xf - mean) ** 2, axis=-1, keepdims=True)
    xn = (xf - mean) / jnp.sqrt(var + 1e-5) * gamma + beta
    h = xn @ w1.astype(jnp.float32)
    d_inner = w2.shape[0]
    hx, gates = h[..., :d_inner], h[..., d_inner:]
    act = jax.nn.silu(gates) * hx
    return (act @ w2.astype(jnp.float32)).astype(x.dtype)


# ---------------------------------------------------------------------------
# Self-test
# ---------------------------------------------------------------------------

if __name__ == "__main__":
    def make_inputs(key, batch, seq, dim, dim_inner, dtype):
        kx, kg, kb, kw1, kw2 = jax.random.split(key, 5)
        x = jax.random.normal(kx, (batch, seq, dim), dtype=jnp.float32).astype(dtype)
        gamma = 1.0 + 0.1 * jax.random.normal(kg, (dim,), dtype=jnp.float32)
        beta = 0.1 * jax.random.normal(kb, (dim,), dtype=jnp.float32)
        w1 = jax.random.uniform(kw1, (dim, 2 * dim_inner), jnp.float32,
                                minval=-1.0 / jnp.sqrt(dim), maxval=1.0 / jnp.sqrt(dim))
        w2 = jax.random.uniform(kw2, (dim_inner, dim), jnp.float32,
                                minval=-1.0 / jnp.sqrt(dim_inner),
                                maxval=1.0 / jnp.sqrt(dim_inner))
        return x, gamma, beta, w1, w2

    key = jax.random.PRNGKey(0)
    k1, k2, k3 = jax.random.split(key, 3)

    # 1) Small shape (batch=2, seq=8, dim=32, expansion=4) -> weights-resident path.
    x, gamma, beta, w1, w2 = make_inputs(k1, 2, 8, 32, 128, jnp.float32)
    out = jax.block_until_ready(transition(x, gamma, beta, w1, w2))
    ref = reference(x, gamma, beta, w1, w2)
    assert out.shape == x.shape
    err = jnp.max(jnp.abs(out.astype(jnp.float32) - ref.astype(jnp.float32)))
    assert jnp.allclose(out, ref, atol=5e-2, rtol=5e-2), f"resident path err={err}"

    # 2) Forced inner-tiled path, f32 output -> accumulate directly in the output block.
    x, gamma, beta, w1, w2 = make_inputs(k2, 2, 8, 64, 256, jnp.float32)
    out = jax.block_until_ready(
        transition(x, gamma, beta, w1, w2, block_inner=128, force_tiled=True))
    ref = reference(x, gamma, beta, w1, w2)
    err = jnp.max(jnp.abs(out.astype(jnp.float32) - ref.astype(jnp.float32)))
    assert jnp.allclose(out, ref, atol=5e-2, rtol=5e-2), f"tiled/f32 path err={err}"

    # 3) Forced inner-tiled path with bf16 activations -> f32 scratch accumulator.
    x, gamma, beta, w1, w2 = make_inputs(k3, 2, 8, 64, 256, jnp.bfloat16)
    out = jax.block_until_ready(
        transition(x, gamma, beta, w1, w2, block_inner=128, force_tiled=True))
    ref = reference(x, gamma, beta, w1, w2)
    err = jnp.max(jnp.abs(out.astype(jnp.float32) - ref.astype(jnp.float32)))
    assert jnp.allclose(out.astype(jnp.float32), ref.astype(jnp.float32),
                        atol=1e-1, rtol=1e-1), f"tiled/bf16 path err={err}"

    print("KERNEL_OK")
</pallas_src>

<mosaic_0001>
module attributes {stable_mosaic.version = 11 : i64} {
  func.func @_transition_resident_kernel(%arg0: i32, %arg1: memref<8x32xf32, #tpu.memory_space<vmem>>, %arg2: memref<32x256xbf16, #tpu.memory_space<vmem>>, %arg3: memref<1x256xf32, #tpu.memory_space<vmem>>, %arg4: memref<128x32xbf16, #tpu.memory_space<vmem>>, %arg5: memref<8x32xf32, #tpu.memory_space<vmem>>) attributes {dimension_semantics = [#tpu.dimension_semantics<parallel>], iteration_bounds = array<i64: 2>, scalar_prefetch = 0 : i64, scratch_operands = 0 : i64, tpu.core_type = #tpu.core_type<tc>, window_params = [{transform_indices = @transform_0, window_bounds = array<i64: 8, 32>}, {pipeline_mode = #tpu.pipeline_mode<synchronous>, transform_indices = @transform_1, window_bounds = array<i64: 32, 256>}, {pipeline_mode = #tpu.pipeline_mode<synchronous>, transform_indices = @transform_2, window_bounds = array<i64: 1, 256>}, {pipeline_mode = #tpu.pipeline_mode<synchronous>, transform_indices = @transform_3, window_bounds = array<i64: 128, 32>}, {transform_indices = @transform_4, window_bounds = array<i64: 8, 32>}]} {
    %c0 = arith.constant 0 : index
    %c0_0 = arith.constant 0 : index
    %0 = vector.load %arg1[%c0, %c0_0] : memref<8x32xf32, #tpu.memory_space<vmem>>, vector<8x32xf32>
    %cst = arith.constant dense<0.000000e+00> : vector<8xf32>
    %1 = vector.multi_reduction <add>, %0, %cst [1] : vector<8x32xf32> to vector<8xf32>
    %2 = vector.shape_cast %1 : vector<8xf32> to vector<8x1xf32>
    %cst_1 = arith.constant 3.200000e+01 : f32
    %3 = vector.broadcast %cst_1 : f32 to vector<8x1xf32>
    %4 = arith.divf %2, %3 : vector<8x1xf32>
    %5 = vector.broadcast %4 : vector<8x1xf32> to vector<8x32xf32>
    %6 = arith.subf %0, %5 : vector<8x32xf32>
    %7 = arith.mulf %6, %6 : vector<8x32xf32>
    %cst_2 = arith.constant dense<0.000000e+00> : vector<8xf32>
    %8 = vector.multi_reduction <add>, %7, %cst_2 [1] : vector<8x32xf32> to vector<8xf32>
    %9 = vector.shape_cast %8 : vector<8xf32> to vector<8x1xf32>
    %cst_3 = arith.constant 3.200000e+01 : f32
    %10 = vector.broadcast %cst_3 : f32 to vector<8x1xf32>
    %11 = arith.divf %9, %10 : vector<8x1xf32>
    %cst_4 = arith.constant 9.99999974E-6 : f32
    %12 = vector.broadcast %cst_4 : f32 to vector<8x1xf32>
    %13 = arith.addf %11, %12 : vector<8x1xf32>
    %14 = math.rsqrt %13 : vector<8x1xf32>
    %15 = vector.broadcast %14 : vector<8x1xf32> to vector<8x32xf32>
    %16 = arith.mulf %6, %15 : vector<8x32xf32>
    %17 = arith.truncf %16 : vector<8x32xf32> to vector<8x32xbf16>
    %c0_5 = arith.constant 0 : index
    %c0_6 = arith.constant 0 : index
    %18 = vector.load %arg2[%c0_5, %c0_6] : memref<32x256xbf16, #tpu.memory_space<vmem>>, vector<32x256xbf16>
    %cst_7 = arith.constant dense<0.000000e+00> : vector<8x256xf32>
    %19 = tpu.matmul %17, %18, %cst_7 {dimension_numbers = #tpu.dot_dimension_numbers<[1], [0], [0], [1], [0, 0, 1, 1], [], []>} : vector<8x32xbf16>, vector<32x256xbf16>, vector<8x256xf32> -> vector<8x256xf32>
    %c0_8 = arith.constant 0 : index
    %c0_9 = arith.constant 0 : index
    %20 = vector.load %arg3[%c0_8, %c0_9] : memref<1x256xf32, #tpu.memory_space<vmem>>, vector<1x256xf32>
    %21 = vector.broadcast %20 : vector<1x256xf32> to vector<8x256xf32>
    %22 = arith.addf %19, %21 : vector<8x256xf32>
    %23 = vector.extract_strided_slice %22 {offsets = [0, 0], sizes = [8, 128], strides = [1, 1]} : vector<8x256xf32> to vector<8x128xf32>
    %24 = vector.extract_strided_slice %22 {offsets = [0, 128], sizes = [8, 128], strides = [1, 1]} : vector<8x256xf32> to vector<8x128xf32>
    %25 = arith.negf %24 : vector<8x128xf32>
    %26 = math.exp %25 : vector<8x128xf32>
    %cst_10 = arith.constant 1.000000e+00 : f32
    %27 = vector.broadcast %cst_10 : f32 to vector<8x128xf32>
    %28 = arith.addf %27, %26 : vector<8x128xf32>
    %29 = arith.divf %27, %28 : vector<8x128xf32>
    %30 = arith.mulf %24, %29 : vector<8x128xf32>
    %31 = arith.mulf %30, %23 : vector<8x128xf32>
    %32 = arith.truncf %31 : vector<8x128xf32> to vector<8x128xbf16>
    %c0_11 = arith.constant 0 : index
    %c0_12 = arith.constant 0 : index
    %33 = vector.load %arg4[%c0_11, %c0_12] : memref<128x32xbf16, #tpu.memory_space<vmem>>, vector<128x32xbf16>
    %cst_13 = arith.constant dense<0.000000e+00> : vector<8x32xf32>
    %34 = tpu.matmul %32, %33, %cst_13 {dimension_numbers = #tpu.dot_dimension_numbers<[1], [0], [0], [1], [0, 0, 1, 1], [], []>} : vector<8x128xbf16>, vector<128x32xbf16>, vector<8x32xf32> -> vector<8x32xf32>
    %c0_14 = arith.constant 0 : index
    %c0_15 = arith.constant 0 : index
    %35 = vector.load %arg5[%c0_14, %c0_15] : memref<8x32xf32, #tpu.memory_space<vmem>>, vector<8x32xf32>
    tpu.vector_store %arg5[%c0_14, %c0_15], %34 {strides = array<i32>} : memref<8x32xf32, #tpu.memory_space<vmem>>, vector<8x32xf32>,
    return
  }
  func.func @transform_0(%arg0: i32) -> (i32, i32) {
    %c0_i32 = arith.constant 0 : i32
    %c0_i32_0 = arith.constant 0 : i32
    return %arg0, %c0_i32 : i32, i32
  }
  func.func @transform_1(%arg0: i32) -> (i32, i32) {
    %c0_i32 = arith.constant 0 : i32
    %c0_i32_0 = arith.constant 0 : i32
    %c0_i32_1 = arith.constant 0 : i32
    return %c0_i32, %c0_i32_0 : i32, i32
  }
  func.func @transform_2(%arg0: i32) -> (i32, i32) {
    %c0_i32 = arith.constant 0 : i32
    %c0_i32_0 = arith.constant 0 : i32
    %c0_i32_1 = arith.constant 0 : i32
    return %c0_i32, %c0_i32_0 : i32, i32
  }
  func.func @transform_3(%arg0: i32) -> (i32, i32) {
    %c0_i32 = arith.constant 0 : i32
    %c0_i32_0 = arith.constant 0 : i32
    %c0_i32_1 = arith.constant 0 : i32
    return %c0_i32, %c0_i32_0 : i32, i32
  }
  func.func @transform_4(%arg0: i32) -> (i32, i32) {
    %c0_i32 = arith.constant 0 : i32
    %c0_i32_0 = arith.constant 0 : i32
    return %arg0, %c0_i32 : i32, i32
  }
}

</mosaic_0001>

<llo_original>
// kernel: transition_apply.1
$region0: #{transition_apply.1}
  #allocation0 [shape = 'u32[]', space=smem, size = 0x4, offset = 0x4, fixed_abs, tag = 'smem constant byte address 0x4 - core index']
  #allocation1 [shape = 'u32[144,128]{1,0:T(1,128)}', space=vmem, size = 0x12000, scoped, tag = 'internal scratch']
  %s0 = inlined_call_operand.vmem [shape: f32[16,32], index: 0, kind: input, shape index: {}]
  %s1 = inlined_call_operand.vmem [shape: bf16[32,256], index: 1, kind: input, shape index: {}]
  %s2 = inlined_call_operand.vmem [shape: f32[1,256], index: 2, kind: input, shape index: {}]
  %s3 = inlined_call_operand.vmem [shape: bf16[128,32], index: 3, kind: input, shape index: {}]
  %s4 = inlined_call_operand.hbm [shape: f32[16,32], index: 4, kind: output, shape index: {}]
  %s5 = sld [smem:[#allocation0]]
  $region49: #{transition_apply.1} parent=0
    _
  %s7 = ssub.s32 1, %s5
  %s8 = scalar_select 0, %s7, %s5
  $region1: #{transition_apply.1} parent=0
    #allocation2 [shape = 'u8[8192]{0}', space=vmem, size = 0x2000, scoped, tag = 'output window, operand 0']
    #allocation3 [shape = 's32[2]{0}', space=sflag, size = 0x8, scoped, tag = 'scoped memory for transition_apply.1']
    %9 = vsyncpa [#allocation3], 0
    %s10 = scalar_lea.sflag [#allocation3], 1
    %11 = vsyncpa %s10, 0
    loop: start=0, step=1, limit=4
    $region2: #{transition_apply.1} parent=1 // loop_pre_header
      _
    $region3: #{transition_apply.1} parent=1 // loop_header
      %s13 = sphi 0, %s17
      %p14 = scmp.ge.s32.totalorder %s13, 4
      %s23 = sphi 0, %s25
      %s26 = sphi 0, %s23
      %s27 = sphi 0, %s26
      %s43 = sphi 0, %s27
      %s47 = sphi 0, %s47
      %s49 = sphi 0, %s47
      %s50 = sphi 0, %s49
      %s64 = sphi 0, %s50
      %s68 = sphi 0, %s68
      %s70 = sphi 0, %s68
      %s71 = sphi 0, %s70
      %s85 = sphi 0, %s71
      %s89 = sphi 0, %s89
      %s91 = sphi 0, %s89
      %s92 = sphi 0, %s91
      %s106 = sphi 0, %s92
      %s112 = sphi 0, %s114
      %s115 = sphi 0, %s112
      %s116 = sphi 0, %s115
      %s132 = sphi 0, %s116
    $region4: #{transition_apply.1} parent=1 // loop_header_branch
      %16 = sbr.rel (%p14) target = $region8
    $region5: #{transition_apply.1} parent=1 // loop_body
      %s18 = ssub.s32 %s13, 1
      %s19 = ssub.s32 %s13, 2
      %s20 = sadd.s32 %s13, 1
      %s21 = ssub.s32 %s13, %s20
      %p22 = scmp.eq.s32.totalorder %s21, 0
      %s24 = sadd.s32 %s23, 1
      %s25 = scalar_select %p22, %s23, %s24
      %p28 = pneg %p22
      %p29 = scmp.eq.s32.totalorder %s13, 1
      %p30 = por %p28, %p29
      %p31 = scmp.ne.s32.totalorder %s23, %s26
      %p32 = scmp.eq.s32.totalorder %s13, 0
      %p33 = por %p31, %p32
      %p34 = scmp.ne.s32.totalorder %s23, %s26
      %p35 = scmp.eq.s32.totalorder %s18, 1
      %p36 = por %p34, %p35
      %p37 = scmp.ne.s32.totalorder %s26, %s27
      %p38 = scmp.eq.s32.totalorder %s18, 0
      %p39 = por %p37, %p38
      %p40 = scmp.ne.s32.totalorder %s26, %s27
      %p41 = scmp.eq.s32.totalorder %s19, 1
      %p42 = por %p40, %p41
      %p44 = scmp.ne.s32.totalorder %s27, %s43
      %p45 = scmp.eq.s32.totalorder %s19, 0
      %p46 = por %p44, %p45
      %s48 = sadd.s32 %s47, 1
      %p51 = scmp.eq.s32.totalorder %s13, 1
      %p52 = scmp.ne.s32.totalorder %s47, %s49
      %p53 = scmp.eq.s32.totalorder %s13, 0
      %p54 = por %p52, %p53
      %p55 = scmp.ne.s32.totalorder %s47, %s49
      %p56 = scmp.eq.s32.totalorder %s18, 1
      %p57 = por %p55, %p56
      %p58 = scmp.ne.s32.totalorder %s49, %s50
      %p59 = scmp.eq.s32.totalorder %s18, 0
      %p60 = por %p58, %p59
      %p61 = scmp.ne.s32.totalorder %s49, %s50
      %p62 = scmp.eq.s32.totalorder %s19, 1
      %p63 = por %p61, %p62
      %p65 = scmp.ne.s32.totalorder %s50, %s64
      %p66 = scmp.eq.s32.totalorder %s19, 0
      %p67 = por %p65, %p66
      %s69 = sadd.s32 %s68, 1
      %p72 = scmp.eq.s32.totalorder %s13, 1
      %p73 = scmp.ne.s32.totalorder %s68, %s70
      %p74 = scmp.eq.s32.totalorder %s13, 0
      %p75 = por %p73, %p74
      %p76 = scmp.ne.s32.totalorder %s68, %s70
      %p77 = scmp.eq.s32.totalorder %s18, 1
      %p78 = por %p76, %p77
      %p79 = scmp.ne.s32.totalorder %s70, %s71
      %p80 = scmp.eq.s32.totalorder %s18, 0
      %p81 = por %p79, %p80
      %p82 = scmp.ne.s32.totalorder %s70, %s71
      %p83 = scmp.eq.s32.totalorder %s19, 1
      %p84 = por %p82, %p83
      %p86 = scmp.ne.s32.totalorder %s71, %s85
      %p87 = scmp.eq.s32.totalorder %s19, 0
      %p88 = por %p86, %p87
      %s90 = sadd.s32 %s89, 1
      %p93 = scmp.eq.s32.totalorder %s13, 1
      %p94 = scmp.ne.s32.totalorder %s89, %s91
      %p95 = scmp.eq.s32.totalorder %s13, 0
      %p96 = por %p94, %p95
      %p97 = scmp.ne.s32.totalorder %s89, %s91
      %p98 = scmp.eq.s32.totalorder %s18, 1
      %p99 = por %p97, %p98
      %p100 = scmp.ne.s32.totalorder %s91, %s92
      %p101 = scmp.eq.s32.totalorder %s18, 0
      %p102 = por %p100, %p101
      %p103 = scmp.ne.s32.totalorder %s91, %s92
      %p104 = scmp.eq.s32.totalorder %s19, 1
      %p105 = por %p103, %p104
      %p107 = scmp.ne.s32.totalorder %s92, %s106
      %p108 = scmp.eq.s32.totalorder %s19, 0
      %p109 = por %p107, %p108
      %s110 = ssub.s32 %s13, %s20
      %p111 = scmp.eq.s32.totalorder %s110, 0
      %s113 = sadd.s32 %s112, 1
      %s114 = scalar_select %p111, %s112, %s113
      %p117 = pneg %p111
      %p118 = scmp.eq.s32.totalorder %s13, 1
      %p119 = por %p117, %p118
      %p120 = scmp.ne.s32.totalorder %s112, %s115
      %p121 = scmp.eq.s32.totalorder %s13, 0
      %p122 = por %p120, %p121
      %p123 = scmp.ne.s32.totalorder %s112, %s115
      %p124 = scmp.eq.s32.totalorder %s18, 1
      %p125 = por %p123, %p124
      %p126 = scmp.ne.s32.totalorder %s115, %s116
      %p127 = scmp.eq.s32.totalorder %s18, 0
      %p128 = por %p126, %p127
      %p129 = scmp.ne.s32.totalorder %s115, %s116
      %p130 = scmp.eq.s32.totalorder %s19, 1
      %p131 = por %p129, %p130
      %p133 = scmp.ne.s32.totalorder %s116, %s132
      %p134 = scmp.eq.s32.totalorder %s19, 0
      %p135 = por %p133, %p134
      %p136 = scmp.le.s32.totalorder 1, %s13
      %p137 = scmp.lt.s32.totalorder %s13, 3
      %p138 = pnand %p136, %p137
      %p139 = pneg %p138
      // Predicated region
      $region9: #{transition_apply.1} parent=5 // pred_check
        _
      $region10: #{transition_apply.1} parent=5 // pred_check_branch
        %141 = sbr.rel (%p138) target = $region12
      $region11: #{transition_apply.1} parent=5 // pred_region
        %s142 = ssub.s32 %s13, 1
        // Predicated region
        $region13: #{transition_apply.1} parent=11 // pred_check
          %p143 = pneg %p60
        $region14: #{transition_apply.1} parent=11 // pred_check_branch
          %145 = sbr.rel (%p143) target = $region16
        $region15: #{transition_apply.1} parent=11 // pred_region
          _
        $region16: #{transition_apply.1} parent=11 // pred_fallthru
          _
        // Predicated region
        $region17: #{transition_apply.1} parent=11 // pred_check
          %p146 = pneg %p81
        $region18: #{transition_apply.1} parent=11 // pred_check_branch
          %148 = sbr.rel (%p146) target = $region20
        $region19: #{transition_apply.1} parent=11 // pred_region
          _
        $region20: #{transition_apply.1} parent=11 // pred_fallthru
          _
        // Predicated region
        $region21: #{transition_apply.1} parent=11 // pred_check
          %p149 = pneg %p102
        $region22: #{transition_apply.1} parent=11 // pred_check_branch
          %151 = sbr.rel (%p149) target = $region24
        $region23: #{transition_apply.1} parent=11 // pred_region
          _
        $region24: #{transition_apply.1} parent=11 // pred_fallthru
          _
      $region12: #{transition_apply.1} parent=5 // pred_fallthru
        _
      %p152 = scmp.lt.s32.totalorder %s13, 2
      // Predicated region
      $region25: #{transition_apply.1} parent=5 // pred_check
        %p153 = pneg %p152
      $region26: #{transition_apply.1} parent=5 // pred_check_branch
        %155 = sbr.rel (%p153) target = $region28
      $region27: #{transition_apply.1} parent=5 // pred_region
        // Predicated region
        $region29: #{transition_apply.1} parent=27 // pred_check
          %p156 = pneg %p33
        $region30: #{transition_apply.1} parent=27 // pred_check_branch
          %158 = sbr.rel (%p156) target = $region32
        $region31: #{transition_apply.1} parent=27 // pred_region
          %p159 = scmp.lt.s32.totalorder %s13, 1
          %s160 = scalar_select %p159, %s13, 1
          %s161 = smul.addr %s160, 8
          %s162 = scalar_lea.vmem %s0, %s161
        $region32: #{transition_apply.1} parent=27 // pred_fallthru
          _
      $region28: #{transition_apply.1} parent=5 // pred_fallthru
        _
      %p163 = scmp.le.s32.totalorder 1, %s13
      %p164 = scmp.lt.s32.totalorder %s13, 3
      %p165 = pnand %p163, %p164
      %p166 = pneg %p165
      // Predicated region
      $region33: #{transition_apply.1} parent=5 // pred_check
        _
      $region34: #{transition_apply.1} parent=5 // pred_check_branch
        %168 = sbr.rel (%p165) target = $region36
      $region35: #{transition_apply.1} parent=5 // pred_region
        %s169 = ssub.s32 %s13, 1
        %p170 = scmp.lt.s32.totalorder %s18, 1
        %s171 = scalar_select %p170, %s18, 1
        %s172 = smul.addr %s171, 8
        %s173 = scalar_lea.vmem %s0, %s172
        %p174 = pneg %p39
        %p175 = pneg %p36
        %p176 = pneg %p60
        %p177 = pneg %p57
        %p178 = pneg %p81
        %p179 = pneg %p78
        %p180 = pneg %p102
        %p181 = pneg %p99
        %p182 = pneg %p128
        %p183 = pneg %p125
        %s184 = sand.u32 %s115, 1
        %s185 = scalar_lea.sflag [#allocation3], %s184
        %s186 = sand.u32 %s115, 1
        %s187 = smul.addr %s186, 8
        %s188 = scalar_lea.vmem [#allocation2], %s187
        %p189 = scmp.lt.s32.totalorder %s18, 1
        %s190 = scalar_select %p189, %s18, 1
        %s191 = smul.addr %s190, 8
        %s192 = scalar_lea.vmem %s0, %s191
        %v194 = vld [vmem:[%s192] sm:$0xff]
        %vm195 = vcmask 261120
        %v196 = vsel %vm195, %v194, 0.0
        %197 = vadd.xlane.f32.xlu0 %v196
        %v198 = vpop.xlane.xlu0 %197
        %v199 = vrcp.pop 32.0
        %v200 = vmul.f32 %v198, %v199
        %v201 = vsub.f32 %v194, %v200
        %v202 = vmul.f32 %v201, %v201
        %v203 = vsel %vm195, %v202, 0.0
        %204 = vadd.xlane.f32.xlu0 %v203
        %v205 = vpop.xlane.xlu0 %204
        %v206 = vmul.f32 %v205, %v199
        %v207 = vadd.f32 %v206, 1e-05
        %v208 = vrsqrt.pop %v207
        %v209 = vmul.f32 %v201, %v208
        %v210 = vpack.c.bf16 %v209, %v209
        %v211 = vld [vmem:[%s1] sm:$0xff]
        %v212 = vld [vmem:[%s1 + $0x8] sm:$0xff]
        %v213 = vld [vmem:[%s1 + $0x10] sm:$0xff]
        %v214 = vld [vmem:[%s1 + $0x18] sm:$0xff]
        %v215 = vld [vmem:[%s2] sm:$0x3]
        %v217 = vlaneseq
        %v218 = vshrl.u32 %v217, 7
        %v219 = vsub.s32 0, %v218
        %v220 = vrot.slane %v215, %v219
        %v221 = vlaneseq
        %v222 = vshrl.u32 %v221, 7
        %v223 = vsub.s32 1, %v222
        %v224 = vrot.slane %v215, %v223
        %v231 = vunpack.c.l.b16 %v211
        %v232 = vunpack.c.h.b16 %v211
        %v233 = vunpack.c.l.b16 %v212
        %v234 = vunpack.c.h.b16 %v212
        %v235 = vunpack.c.l.b16 %v213
        %v236 = vunpack.c.h.b16 %v213
        %v237 = vunpack.c.l.b16 %v214
        %v238 = vunpack.c.h.b16 %v214
        %v239 = vpack.c.b16 %v233, %v231
        %v240 = vpack.c.b16 %v234, %v232
        %v241 = vpack.c.b16 %v237, %v235
        %v242 = vpack.c.b16 %v238, %v236
        %v248 = vsel %vm195, %v210, 0
        %250 = vmatprep.subr.bf16.mxu0 0
        %251 = vmatpush1.bf16.msra.mxu0 0
        %252 = vmatprep.subr.bf16.mxu0 0
        %253 = vmatpush1.bf16.msra.mxu0 0
        %254 = vmatprep.subr.bf16.mxu0 0
        %255 = vmatpush1.bf16.msra.mxu0 0
        %256 = vmatprep.subr.bf16.mxu0 0
        %257 = vmatpush1.bf16.msra.mxu0 0
        %258 = vmatprep.subr.bf16.mxu0 0
        %259 = vmatpush1.bf16.msra.mxu0 0
        %260 = vmatprep.subr.bf16.mxu0 0
        %261 = vmatpush1.bf16.msra.mxu0 0
        %262 = vmatprep.subr.bf16.mxu0 %v242
        %263 = vmatpush1.bf16.msra.mxu0 %v241
        %264 = vmatprep.subr.bf16.mxu0 %v240
        %265 = vmatpush1.bf16.msra.mxu0 %v239
        %266 = vmatprep.subr.bf16.mxu0 0
        %267 = vmatpush2.bf16.msra.mxu0 0
        %268 = vmatprep.subr.bf16.mxu0 0
        %269 = vmatpush2.bf16.msra.mxu0 0
        %270 = vmatprep.subr.bf16.mxu0 0
        %271 = vmatpush2.bf16.msra.mxu0 0
        %272 = vmatprep.subr.bf16.mxu0 0
        %273 = vmatpush2.bf16.msra.mxu0 0
        %274 = vmatprep.subr.bf16.mxu0 0
        %275 = vmatpush2.bf16.msra.mxu0 0
        %276 = vmatprep.subr.bf16.mxu0 0
        %277 = vmatpush2.bf16.msra.mxu0 0
        %278 = vmatprep.subr.bf16.mxu0 0
        %279 = vmatpush2.bf16.msra.mxu0 0
        %280 = vmatprep.subr.bf16.mxu0 0
        %281 = vmatpush2.bf16.msra.mxu0 0
        %282 = vmatprep.mubr.bf16.mxu0 0
        %283 = vmatmul.mubr.bf16.gmra.mxu0 %v248
        %v284 = vpop.f32.mrf.mxu0
        %v285 = vadd.f32 %v220, %v284
        %v286 = vpop.f32.mrf.mxu0
        %v287 = vadd.f32 %v224, %v286
        %v288 = vpop.f32.mrf.mxu0
        %v289 = vpop.f32.mrf.mxu0
        %290 = vdwg.mxu0
        %v291 = vxor.u32 %v287, 2147483648
        %v292 = vmul.f32 %v291, 1.442695
        %v293 = vpow.pop %v292
        %v294 = vadd.f32 %v293, 1.0
        %v295 = vrcp.pop %v294
        %v296 = vmul.f32 1.0, %v295
        %v297 = vmul.f32 %v287, %v296
        %v298 = vmul.f32 %v297, %v285
        %v299 = vpack.c.bf16 %v298, %v298
        %v300 = vld [vmem:[%s3] sm:$0xf]
        %v301 = vld [vmem:[%s3 + $0x4] sm:$0xf]
        %v302 = vld [vmem:[%s3 + $0x8] sm:$0xf]
        %v303 = vld [vmem:[%s3 + $0xc] sm:$0xf]
        %v304 = vld [vmem:[%s3 + $0x10] sm:$0xf]
        %v305 = vld [vmem:[%s3 + $0x14] sm:$0xf]
        %v306 = vld [vmem:[%s3 + $0x18] sm:$0xf]
        %v307 = vld [vmem:[%s3 + $0x1c] sm:$0xf]
        %v308 = vld [vmem:[%s3 + $0x20] sm:$0xf]
        %v309 = vld [vmem:[%s3 + $0x24] sm:$0xf]
        %v310 = vld [vmem:[%s3 + $0x28] sm:$0xf]
        %v311 = vld [vmem:[%s3 + $0x2c] sm:$0xf]
        %v312 = vld [vmem:[%s3 + $0x30] sm:$0xf]
        %v313 = vld [vmem:[%s3 + $0x34] sm:$0xf]
        %v314 = vld [vmem:[%s3 + $0x38] sm:$0xf]
        %v315 = vld [vmem:[%s3 + $0x3c] sm:$0xf]
        %v332 = vunpack.c.l.b16 %v300
        %v333 = vunpack.c.l.b16 %v301
        %v334 = vunpack.c.l.b16 %v302
        %v335 = vunpack.c.l.b16 %v303
        %v336 = vunpack.c.l.b16 %v304
        %v337 = vunpack.c.l.b16 %v305
        %v338 = vunpack.c.l.b16 %v306
        %v339 = vunpack.c.l.b16 %v307
        %v340 = vunpack.c.l.b16 %v308
        %v341 = vunpack.c.l.b16 %v309
        %v342 = vunpack.c.l.b16 %v310
        %v343 = vunpack.c.l.b16 %v311
        %v344 = vunpack.c.l.b16 %v312
        %v345 = vunpack.c.l.b16 %v313
        %v346 = vunpack.c.l.b16 %v314
        %v347 = vunpack.c.l.b16 %v315
        %v348 = vpack.c.b16 %v333, %v332
        %v349 = vpack.c.b16 %v335, %v334
        %v350 = vpack.c.b16 %v337, %v336
        %v351 = vpack.c.b16 %v339, %v338
        %v352 = vpack.c.b16 %v341, %v340
        %v353 = vpack.c.b16 %v343, %v342
        %v354 = vpack.c.b16 %v345, %v344
        %v355 = vpack.c.b16 %v347, %v346
        %364 = vmatprep.subr.bf16.mxu0 0
        %365 = vmatpush1.bf16.msra.mxu0 %v355
        %366 = vmatprep.subr.bf16.mxu0 0
        %367 = vmatpush1.bf16.msra.mxu0 %v354
        %368 = vmatprep.subr.bf16.mxu0 0
        %369 = vmatpush1.bf16.msra.mxu0 %v353
        %370 = vmatprep.subr.bf16.mxu0 0
        %371 = vmatpush1.bf16.msra.mxu0 %v352
        %372 = vmatprep.subr.bf16.mxu0 0
        %373 = vmatpush1.bf16.msra.mxu0 %v351
        %374 = vmatprep.subr.bf16.mxu0 0
        %375 = vmatpush1.bf16.msra.mxu0 %v350
        %376 = vmatprep.subr.bf16.mxu0 0
        %377 = vmatpush1.bf16.msra.mxu0 %v349
        %378 = vmatprep.subr.bf16.mxu0 0
        %379 = vmatpush1.bf16.msra.mxu0 %v348
        %380 = vmatprep.subr.bf16.mxu0 0
        %381 = vmatpush2.bf16.msra.mxu0 0
        %382 = vmatprep.subr.bf16.mxu0 0
        %383 = vmatpush2.bf16.msra.mxu0 0
        %384 = vmatprep.subr.bf16.mxu0 0
        %385 = vmatpush2.bf16.msra.mxu0 0
        %386 = vmatprep.subr.bf16.mxu0 0
        %387 = vmatpush2.bf16.msra.mxu0 0
        %388 = vmatprep.subr.bf16.mxu0 0
        %389 = vmatpush2.bf16.msra.mxu0 0
        %390 = vmatprep.subr.bf16.mxu0 0
        %391 = vmatpush2.bf16.msra.mxu0 0
        %392 = vmatprep.subr.bf16.mxu0 0
        %393 = vmatpush2.bf16.msra.mxu0 0
        %394 = vmatprep.subr.bf16.mxu0 0
        %395 = vmatpush2.bf16.msra.mxu0 0
        %396 = vmatprep.mubr.bf16.mxu0 0
        %397 = vmatmul.mubr.bf16.gmra.mxu0 %v299
        %v398 = vpop.f32.mrf.mxu0
        %v399 = vadd.f32 0.0, %v398
        %v400 = vpop.f32.mrf.mxu0
        %v401 = vpop.f32.mrf.mxu0
        %v402 = vpop.f32.mrf.mxu0
        %403 = vdwg.mxu0
        %404 = vst.msk [vmem:[%s188] sm:$0xff] %vm195, %v399
        %s405 = sand.u32 %s115, 1
        %s406 = scalar_lea.sflag [#allocation3], %s405
        %s407 = sand.u32 %s115, 1
        %s408 = smul.addr %s407, 8
        %s409 = scalar_lea.vmem [#allocation2], %s408
        // Predicated region
        $region37: #{transition_apply.1} parent=35 // pred_check
          %p410 = pneg %p125
        $region38: #{transition_apply.1} parent=35 // pred_check_branch
          %412 = sbr.rel (%p410) target = $region40
        $region39: #{transition_apply.1} parent=35 // pred_region
          %s414 = ssub.s32 128, 128
          %415 = vsyncadd %s406, %s414
          %s416 = smul.addr %s18, 128
          %s417 = scalar_lea.hbm %s4, %s416
          %s419 = sshll.u32 %s409, 4
          %s420 = int_to_ptr.vmem [resolvable:$true] %s419
          %422 = dma.vmem_to_hbm [thread:$0]  %s420, 128, %s417, %s406
        $region40: #{transition_apply.1} parent=35 // pred_fallthru
          _
      $region36: #{transition_apply.1} parent=5 // pred_fallthru
        _
      %p423 = scmp.le.s32.totalorder 2, %s13
      // Predicated region
      $region41: #{transition_apply.1} parent=5 // pred_check
        %p424 = pneg %p423
      $region42: #{transition_apply.1} parent=5 // pred_check_branch
        %426 = sbr.rel (%p424) target = $region44
      $region43: #{transition_apply.1} parent=5 // pred_region
        %s427 = ssub.s32 %s13, 2
        // Predicated region
        $region45: #{transition_apply.1} parent=43 // pred_check
          %p428 = pneg %p131
        $region46: #{transition_apply.1} parent=43 // pred_check_branch
          %430 = sbr.rel (%p428) target = $region48
        $region47: #{transition_apply.1} parent=43 // pred_region
          %s431 = sand.u32 %s116, 1
          %s432 = scalar_lea.sflag [#allocation3], %s431
          %s433 = sand.u32 %s116, 1
          %s434 = smul.addr %s433, 8
          %s435 = scalar_lea.vmem [#allocation2], %s434
          %436 = dma.done %s432, 128
        $region48: #{transition_apply.1} parent=43 // pred_fallthru
          _
      $region44: #{transition_apply.1} parent=5 // pred_fallthru
        _
    $region6: #{transition_apply.1} parent=1 // loop_footer
      %s17 = sadd.s32 1, %s13
    $region7: #{transition_apply.1} parent=1 // loop_footer_branch
      %12 = sbr.rel target = $region3
    $region8: #{transition_apply.1} parent=1 // loop_exit
      _
    %437 = vsyncpa [#allocation3], 1
    %s438 = scalar_lea.sflag [#allocation3], 1
    %439 = vsyncpa %s438, 1

</llo_original>
